<compile_context>
chip_gen: v6e
topology: v6e:2x2x1
jax: 0.10.0
libtpu: 0.0.40
codegen_flags: <defaults>
</compile_context>

<pallas_src>
import jax
import jax.numpy as jnp
from jax.experimental import pallas as pl
from jax.experimental.pallas import tpu as pltpu

_MIB = 1024 * 1024


def _uap_add_kernel(x_ref, uap_ref, o_ref):
    # Pure VPU add; uap broadcasts across the leading (batch) axis of the block.
    o_ref[...] = (x_ref[...] + uap_ref[...]).astype(o_ref.dtype)


def _divisors(n):
    small, large = [], []
    i = 1
    while i * i <= n:
        if n % i == 0:
            small.append(i)
            if i != n // i:
                large.append(n // i)
        i += 1
    return small + large[::-1]


def _largest_divisor(n, limit, multiple_of=1):
    best = None
    for d in _divisors(n):
        if d <= limit and d % multiple_of == 0:
            best = d
    return best


def _min_sublanes(*dtypes):
    isz = min(jnp.dtype(d).itemsize for d in dtypes)
    return max(8, 32 // isz)  # 8 for 4B, 16 for 2B, 32 for 1B dtypes


def _pad_up(v, m):
    return ((v + m - 1) // m) * m


def _padded_block_bytes(block_shape, dtype):
    """VMEM footprint of one buffer of block_shape, incl. (sublane, lane) padding."""
    isz = jnp.dtype(dtype).itemsize
    shape = list(block_shape)
    shape[-1] = _pad_up(shape[-1], 128)
    if len(shape) >= 2:
        shape[-2] = _pad_up(shape[-2], max(8, 32 // isz))
    n = 1
    for s in shape:
        n *= s
    return n * isz


def _plan(N, D, x_dtype, out_dtype, budget_bytes):
    x_isz = jnp.dtype(x_dtype).itemsize
    out_isz = jnp.dtype(out_dtype).itemsize
    big_isz = max(x_isz, out_isz)
    min_sub = _min_sublanes(x_dtype, out_dtype)

    # Ensure >= ~4 grid steps for large inputs so the BlockSpec pipeline overlaps
    # inbound DMA with compute and writeback (and v7x's 2 TCs both get work).
    budget = budget_bytes
    total_x = N * D * big_isz
    if total_x >= 4 * _MIB:
        budget = min(budget, max(_MIB, total_x // 4))

    # ---- Small-batch fold: x -> (N, G, TD) so feature chunks fill the sublane axis.
    if N < min_sub and D % 128 == 0 and D // 128 >= 2:
        td = _largest_divisor(D, 2048, multiple_of=128)
        if td is None or D // td < min_sub:
            td = 128
        G = D // td
        if G > N:  # only fold if it actually improves sublane packing
            rows_cap = max(1, budget // (N * td * big_isz))
            tg = _largest_divisor(G, rows_cap, multiple_of=min_sub)
            if tg is None:
                tg = _largest_divisor(G, rows_cap) or G  # full-extent fallback (legal)
            return dict(layout="fold", TD=td, G=G, TG=tg, TN=N)

    # ---- Flat lane-dense 2-D (N, D) view.
    lane_cap = max(1, budget // (min_sub * big_isz))
    td = None
    if D % 128 == 0:
        td = _largest_divisor(D, lane_cap, multiple_of=128)
    if td is None:
        # D not a 128-multiple (or too big): still respect the VMEM budget
        # (never the unchecked TD = D of the previous version).
        td = _largest_divisor(D, lane_cap) or 1
    rows_cap = max(1, budget // (td * big_isz))
    tn = _largest_divisor(N, rows_cap, multiple_of=min_sub)
    if tn is None:
        tn = N if N <= rows_cap else (_largest_divisor(N, rows_cap) or 1)
    return dict(layout="flat", TD=td, TN=tn)


def uap_forward(x, uap, *, block_budget_bytes=6 * _MIB, donate_x=False):
    """Pallas TPU implementation of UAP.forward: adv_x = x + uap (broadcast over batch)."""
    N = x.shape[0]
    assert x.shape[1:] == uap.shape, "uap must match x's per-sample shape"
    D = 1
    for s in uap.shape:
        D *= s

    # PyTorch-style type promotion (e.g. bf16 activations + f32 uap -> f32 out).
    out_dtype = jnp.promote_types(x.dtype, uap.dtype)

    plan = _plan(N, D, x.dtype, out_dtype, block_budget_bytes)

    if plan["layout"] == "flat":
        TN, TD = plan["TN"], plan["TD"]
        x2 = x.reshape(N, D)
        u2 = uap.reshape(1, D)
        # uap's axis (j) is the OUTER grid axis -> uap block index is constant
        # across the inner batch axis, so it stays resident in VMEM.
        grid = (D // TD, N // TN)
        in_specs = [
            pl.BlockSpec((TN, TD), lambda j, i: (i, j)),
            pl.BlockSpec((1, TD), lambda j, i: (0, j)),
        ]
        out_spec = pl.BlockSpec((TN, TD), lambda j, i: (i, j))
        out_shape2 = (N, D)
        blk_x, blk_u = (TN, TD), (1, TD)
    else:  # small-batch fold
        TD, G, TG, TN = plan["TD"], plan["G"], plan["TG"], plan["TN"]
        x2 = x.reshape(N, G, TD)
        u2 = uap.reshape(1, G, TD)
        grid = (G // TG,)
        in_specs = [
            pl.BlockSpec((TN, TG, TD), lambda g: (0, g, 0)),
            pl.BlockSpec((1, TG, TD), lambda g: (0, g, 0)),
        ]
        out_spec = pl.BlockSpec((TN, TG, TD), lambda g: (0, g, 0))
        out_shape2 = (N, G, TD)
        blk_x, blk_u = (TN, TG, TD), (1, TG, TD)

    # Explicit VMEM limit: 2x double-buffered x blocks + 2x out blocks + 2x uap
    # blocks (padded footprints) + margin; >= v5e's 16 MiB default when needed,
    # comfortably under v7x's 64 MiB physical VMEM.
    need = (2 * _padded_block_bytes(blk_x, x.dtype)
            + 2 * _padded_block_bytes(blk_x, out_dtype)
            + 2 * _padded_block_bytes(blk_u, uap.dtype)
            + 2 * _MIB)
    vmem_limit = int(min(max(need, 4 * _MIB), 48 * _MIB))

    cost = pl.CostEstimate(
        flops=N * D,
        transcendentals=0,
        bytes_accessed=N * D * (jnp.dtype(x.dtype).itemsize
                                + jnp.dtype(out_dtype).itemsize)
        + D * jnp.dtype(uap.dtype).itemsize,
    )

    io_aliases = {0: 0} if (donate_x and x.dtype == jnp.dtype(out_dtype)) else {}

    out2 = pl.pallas_call(
        _uap_add_kernel,
        out_shape=jax.ShapeDtypeStruct(out_shape2, out_dtype),
        grid_spec=pltpu.PrefetchScalarGridSpec(
            num_scalar_prefetch=0,
            grid=grid,
            in_specs=in_specs,
            out_specs=out_spec,
        ),
        compiler_params=pltpu.CompilerParams(
            dimension_semantics=("parallel",) * len(grid),
            vmem_limit_bytes=vmem_limit,
        ),
        cost_estimate=cost,
        input_output_aliases=io_aliases,
    )(x2, u2)

    return out2.reshape(x.shape)


if __name__ == "__main__":
    key = jax.random.PRNGKey(0)
    kx, ku, kx2, ku2 = jax.random.split(key, 4)

    # Small shapes consistent with the module: num_channels=3, small spatial.
    N, C, H, W = 2, 3, 16, 16
    x = jax.random.normal(kx, (N, C, H, W), dtype=jnp.float32)
    # Module's __init__ uses zeros; use a small deterministic perturbation so the
    # broadcast-add is actually exercised.
    uap = 0.01 * jax.random.normal(ku, (C, H, W), dtype=jnp.float32)

    adv_x = jax.block_until_ready(uap_forward(x, uap))
    ref = x + uap[None]
    assert adv_x.shape == x.shape and adv_x.dtype == ref.dtype
    assert jnp.allclose(adv_x, ref, atol=1e-6), "mismatch vs reference (fold path)"

    # Second check: flat path (N >= 8) + PyTorch-style dtype promotion (bf16 + f32).
    N2, C2, H2, W2 = 16, 3, 8, 16
    xb = jax.random.normal(kx2, (N2, C2, H2, W2), dtype=jnp.bfloat16)
    ub = 0.01 * jax.random.normal(ku2, (C2, H2, W2), dtype=jnp.float32)
    advb = jax.block_until_ready(uap_forward(xb, ub))
    refb = xb + ub[None]
    assert advb.dtype == refb.dtype
    assert jnp.allclose(advb, refb, atol=1e-6), "mismatch vs reference (flat path)"

    print("KERNEL_OK")
</pallas_src>

<mosaic_0001>
module attributes {stable_mosaic.version = 11 : i64} {
  func.func @_uap_add_kernel(%arg0: i32, %arg1: memref<2x6x128xf32, #tpu.memory_space<vmem>>, %arg2: memref<1x6x128xf32, #tpu.memory_space<vmem>>, %arg3: memref<2x6x128xf32, #tpu.memory_space<vmem>>) attributes {dimension_semantics = [#tpu.dimension_semantics<parallel>], iteration_bounds = array<i64: 1>, scalar_prefetch = 0 : i64, scratch_operands = 0 : i64, tpu.core_type = #tpu.core_type<tc>, window_params = [{transform_indices = @transform_0, window_bounds = array<i64: 2, 6, 128>}, {transform_indices = @transform_1, window_bounds = array<i64: 1, 6, 128>}, {transform_indices = @transform_2, window_bounds = array<i64: 2, 6, 128>}]} {
    %c0 = arith.constant 0 : index
    %c0_0 = arith.constant 0 : index
    %c0_1 = arith.constant 0 : index
    %0 = vector.load %arg1[%c0, %c0_0, %c0_1] : memref<2x6x128xf32, #tpu.memory_space<vmem>>, vector<2x6x128xf32>
    %c0_2 = arith.constant 0 : index
    %c0_3 = arith.constant 0 : index
    %c0_4 = arith.constant 0 : index
    %1 = vector.load %arg2[%c0_2, %c0_3, %c0_4] : memref<1x6x128xf32, #tpu.memory_space<vmem>>, vector<1x6x128xf32>
    %2 = vector.broadcast %1 : vector<1x6x128xf32> to vector<2x6x128xf32>
    %3 = arith.addf %0, %2 : vector<2x6x128xf32>
    %c0_5 = arith.constant 0 : index
    %c0_6 = arith.constant 0 : index
    %c0_7 = arith.constant 0 : index
    %4 = vector.load %arg3[%c0_5, %c0_6, %c0_7] : memref<2x6x128xf32, #tpu.memory_space<vmem>>, vector<2x6x128xf32>
    tpu.vector_store %arg3[%c0_5, %c0_6, %c0_7], %3 {strides = array<i32>} : memref<2x6x128xf32, #tpu.memory_space<vmem>>, vector<2x6x128xf32>,
    return
  }
  func.func @transform_0(%arg0: i32) -> (i32, i32, i32) {
    %c0_i32 = arith.constant 0 : i32
    %c0_i32_0 = arith.constant 0 : i32
    %c0_i32_1 = arith.constant 0 : i32
    return %c0_i32, %arg0, %c0_i32_0 : i32, i32, i32
  }
  func.func @transform_1(%arg0: i32) -> (i32, i32, i32) {
    %c0_i32 = arith.constant 0 : i32
    %c0_i32_0 = arith.constant 0 : i32
    %c0_i32_1 = arith.constant 0 : i32
    return %c0_i32, %arg0, %c0_i32_0 : i32, i32, i32
  }
  func.func @transform_2(%arg0: i32) -> (i32, i32, i32) {
    %c0_i32 = arith.constant 0 : i32
    %c0_i32_0 = arith.constant 0 : i32
    %c0_i32_1 = arith.constant 0 : i32
    return %c0_i32, %arg0, %c0_i32_0 : i32, i32, i32
  }
}

</mosaic_0001>

<llo_original>
// kernel: tpu_custom_call.1
$region0: #{tpu_custom_call.1}
  #allocation0 [shape = 'u32[]', space=smem, size = 0x4, offset = 0x4, fixed_abs, tag = 'smem constant byte address 0x4 - core index']
  #allocation1 [shape = 'u32[144,128]{1,0:T(1,128)}', space=vmem, size = 0x12000, scoped, tag = 'internal scratch']
  %s0 = inlined_call_operand.vmem [shape: f32[2,6,128], index: 0, kind: input, shape index: {}]
  %s1 = inlined_call_operand.vmem [shape: f32[1,6,128], index: 1, kind: input, shape index: {}]
  %s2 = inlined_call_operand.vmem [shape: f32[2,6,128], index: 2, kind: output, shape index: {}]
  %s3 = sld [smem:[#allocation0]]
  $region18: #{tpu_custom_call.1} parent=0
    _
  %s5 = ssub.s32 1, %s3
  %s6 = scalar_select 0, %s5, %s3
  // Predicated region
  $region2: #{tpu_custom_call.1} parent=0 // pred_check
    _
  $region3: #{tpu_custom_call.1} parent=0 // pred_check_branch
    %8 = sbr.rel (0) target = $region5
  $region4: #{tpu_custom_call.1} parent=0 // pred_region
    _
  $region5: #{tpu_custom_call.1} parent=0 // pred_fallthru
    _
  // Predicated region
  $region6: #{tpu_custom_call.1} parent=0 // pred_check
    _
  $region7: #{tpu_custom_call.1} parent=0 // pred_check_branch
    %10 = sbr.rel (0) target = $region9
  $region8: #{tpu_custom_call.1} parent=0 // pred_region
    _
  $region9: #{tpu_custom_call.1} parent=0 // pred_fallthru
    _
  %v11 = vld [vmem:[%s0] sm:$0x3f]
  %v12 = vld [vmem:[%s0 + $0x8] sm:$0x3f]
  %v13 = vld [vmem:[%s1] sm:$0x3f]
  %v14 = vadd.f32 %v11, %v13
  %v15 = vadd.f32 %v12, %v13
  %16 = vst [vmem:[%s2] sm:$0x3f] %v14
  %17 = vst [vmem:[%s2 + $0x8] sm:$0x3f] %v15
  // Predicated region
  $region10: #{tpu_custom_call.1} parent=0 // pred_check
    _
  $region11: #{tpu_custom_call.1} parent=0 // pred_check_branch
    %19 = sbr.rel (0) target = $region13
  $region12: #{tpu_custom_call.1} parent=0 // pred_region
    _
  $region13: #{tpu_custom_call.1} parent=0 // pred_fallthru
    _
  // Predicated region
  $region14: #{tpu_custom_call.1} parent=0 // pred_check
    _
  $region15: #{tpu_custom_call.1} parent=0 // pred_check_branch
    %21 = sbr.rel (0) target = $region17
  $region16: #{tpu_custom_call.1} parent=0 // pred_region
    _
  $region17: #{tpu_custom_call.1} parent=0 // pred_fallthru
    _

</llo_original>
